<compile_context>
chip_gen: v6e
topology: v6e:2x2x1
jax: 0.10.0
libtpu: 0.0.40
codegen_flags: <defaults>
</compile_context>

<pallas_src>
import functools

import jax
import jax.numpy as jnp
from jax.experimental import pallas as pl
from jax.experimental.pallas import tpu as pltpu

_L = 128  # lane width; hidden size (64) occupies half a vreg row


def _gru_policy_kernel(x_ref, hx0_ref, w_ref, b_ref, out_ref, h_carry):
    """One GRU-policy step per grid iteration; hidden state carried in VMEM.

    Lane layout (all blocks 128-wide):
      x     : lanes [0:input_size], zero-padded (f32, cast to bf16 for the MXU)
      h1    : lanes [0:64]   (shared layer 1, ReLU)
      h2    : lanes [64:128] (shared layer 2, ReLU)
      z_in  : lanes [0:64]=hx, [64:128]=h2 -- built with a plain add
      w_ref : bf16 (128, 7*128) = [ W1 | W2 | Wgru (4 groups of 128) | Whead ]
      b_ref : f32  (8, 128) = [b1, b2, bir+bhr, biz+bhz, bin, bhn, b_head, 0]
      out   : (Bp, 256) = [ h_new (valid 0:64) | policy (0:O), value (O), pad ]
    """
    f32, bf16 = jnp.float32, jnp.bfloat16
    L = _L

    @pl.when(pl.program_id(0) == 0)
    def _():
        h_carry[...] = hx0_ref[...]

    hx = h_carry[...]                                   # f32, valid lanes 0:64

    # shared MLP: two Linear + ReLU (bf16 operands, f32 accumulation)
    h1 = jnp.dot(x_ref[...].astype(bf16), w_ref[:, 0:L],
                 preferred_element_type=f32) + b_ref[0:1, :]
    h1 = jnp.maximum(h1, 0.0)                           # valid lanes 0:64
    h2 = jnp.dot(h1.astype(bf16), w_ref[:, L:2 * L],
                 preferred_element_type=f32) + b_ref[1:2, :]
    h2 = jnp.maximum(h2, 0.0)                           # valid lanes 64:128

    # fused GRU gates: a single K=128 matmul over [hx | h2]
    z_in = (h2 + hx).astype(bf16)                       # disjoint lanes -> pure pack
    g = jnp.dot(z_in, w_ref[:, 2 * L:6 * L], preferred_element_type=f32)  # (Bp, 512)

    r = jax.nn.sigmoid(g[:, 0:L] + b_ref[2:3, :])
    z = jax.nn.sigmoid(g[:, L:2 * L] + b_ref[3:4, :])
    n = jnp.tanh(g[:, 2 * L:3 * L] + b_ref[4:5, :]
                 + r * (g[:, 3 * L:4 * L] + b_ref[5:6, :]))
    h_new = (1.0 - z) * n + z * hx                      # padding lanes stay exactly 0

    # fused policy|value head (lane-padded to 128 columns)
    heads = jnp.dot(h_new.astype(bf16), w_ref[:, 6 * L:7 * L],
                    preferred_element_type=f32) + b_ref[6:7, :]

    h_carry[...] = h_new                                # carry to next step
    out_ref[...] = jnp.concatenate([h_new, heads], axis=-1)   # single (Bp,256) store


@functools.partial(jax.jit, static_argnames=("output_size",))
def gru_policy_forward_seq(x_seq, hx0, packed, output_size):
    """Rollout over a sequence. x_seq: (T, B, input_size), hx0: (B, H).
    Returns (policy (T,B,O), value (T,B,1), hx_out (B,H)) from ONE pallas_call."""
    T, B, D_in = x_seq.shape
    H = hx0.shape[-1]
    L = _L
    Bp = max(8, ((B + 7) // 8) * 8)   # sublane multiple

    x_p = jnp.zeros((T, Bp, L), jnp.float32).at[:, :B, :D_in].set(
        x_seq.astype(jnp.float32))
    hx_p = jnp.zeros((Bp, L), jnp.float32).at[:B, :H].set(hx0.astype(jnp.float32))

    w_pack, bias = packed["w_pack"], packed["bias"]
    flops = 2 * T * Bp * 7 * L * L
    bytes_accessed = (x_p.size * 4 + hx_p.size * 4 + w_pack.size * 2
                      + bias.size * 4 + T * Bp * 2 * L * 4)

    slab = pl.pallas_call(
        _gru_policy_kernel,
        grid=(T,),
        in_specs=[
            pl.BlockSpec((None, Bp, L), lambda t: (t, 0, 0)),   # x: per-step block
            pl.BlockSpec((Bp, L), lambda t: (0, 0)),            # hx0: resident
            pl.BlockSpec((L, 7 * L), lambda t: (0, 0)),         # weights: resident
            pl.BlockSpec((8, L), lambda t: (0, 0)),             # biases: resident
        ],
        out_specs=pl.BlockSpec((None, Bp, 2 * L), lambda t: (t, 0, 0)),
        out_shape=jax.ShapeDtypeStruct((T, Bp, 2 * L), jnp.float32),
        scratch_shapes=[pltpu.VMEM((Bp, L), jnp.float32)],       # carried hidden state
        compiler_params=pltpu.CompilerParams(dimension_semantics=("arbitrary",)),
        cost_estimate=pl.CostEstimate(flops=flops,
                                      transcendentals=3 * T * Bp * L,
                                      bytes_accessed=bytes_accessed),
    )(x_p, hx_p, w_pack, bias)

    policy = slab[:, :B, L:L + output_size]
    value = slab[:, :B, L + output_size:L + output_size + 1]
    hx_out = slab[-1, :B, :H]
    return policy, value, hx_out


def gru_policy_forward(x, hx, packed, output_size):
    """Single step, matching GRUPolicy.forward (both the 1-D and batched branch)."""
    if x.ndim == 1:
        p, v, h = gru_policy_forward_seq(x[None, None, :], hx[None, :],
                                         packed, output_size)
        return p[0, 0], v[0, 0], h[0]
    p, v, h = gru_policy_forward_seq(x[None], hx, packed, output_size)
    return p[0], v[0], h


def init_params(key, input_size, output_size, hidden_size=64, gru_hidden_size=64):
    """Deterministic synthetic parameters (stored transposed vs PyTorch)."""
    ks = jax.random.split(key, 20)

    def w(k, shape, scale):
        return jax.random.uniform(k, shape, jnp.float32, -1.0, 1.0) * scale

    s1 = 1.0 / jnp.sqrt(input_size)
    s2 = 1.0 / jnp.sqrt(hidden_size)
    sg = 1.0 / jnp.sqrt(gru_hidden_size)
    return {
        "w1": w(ks[0], (input_size, hidden_size), s1),
        "b1": w(ks[1], (1, hidden_size), s1),
        "w2": w(ks[2], (hidden_size, hidden_size), s2),
        "b2": w(ks[3], (1, hidden_size), s2),
        "wir": w(ks[4], (hidden_size, gru_hidden_size), sg),
        "wiz": w(ks[5], (hidden_size, gru_hidden_size), sg),
        "win": w(ks[6], (hidden_size, gru_hidden_size), sg),
        "whr": w(ks[7], (gru_hidden_size, gru_hidden_size), sg),
        "whz": w(ks[8], (gru_hidden_size, gru_hidden_size), sg),
        "whn": w(ks[9], (gru_hidden_size, gru_hidden_size), sg),
        "bir": w(ks[10], (1, gru_hidden_size), sg),
        "biz": w(ks[11], (1, gru_hidden_size), sg),
        "bin": w(ks[12], (1, gru_hidden_size), sg),
        "bhr": w(ks[13], (1, gru_hidden_size), sg),
        "bhz": w(ks[14], (1, gru_hidden_size), sg),
        "bhn": w(ks[15], (1, gru_hidden_size), sg),
        "wp": w(ks[16], (gru_hidden_size, output_size), s2),
        "bp": w(ks[17], (1, output_size), s2),
        "wv": w(ks[18], (gru_hidden_size, 1), s2),
        "bv": w(ks[19], (1, 1), s2),
    }


def pack_params(p):
    """One-time host-side packing: bf16 (128, 896) weight pack + f32 (8, 128) bias."""
    L = _L
    D_in = p["w1"].shape[0]
    H = p["w2"].shape[0]
    G = p["whr"].shape[0]
    O = p["wp"].shape[1]
    assert H == G == L // 2, "layout assumes hidden_size == gru_hidden_size == 64"
    assert D_in <= L and O + 1 <= L

    def place(sub, rows, cols, r0, c0):
        return jnp.zeros((rows, cols), jnp.float32).at[
            r0:r0 + sub.shape[0], c0:c0 + sub.shape[1]].set(sub)

    w1 = place(p["w1"], L, L, 0, 0)      # x(lanes 0:D_in) -> h1 lanes 0:H
    w2 = place(p["w2"], L, L, 0, H)      # h1(lanes 0:H)   -> h2 lanes H:128
    # fused GRU block: rows 0:H multiply hx (lanes 0:H), rows H:128 multiply h2
    wg = jnp.zeros((L, 4 * L), jnp.float32)
    wg = wg.at[0:H, 0:H].set(p["whr"]).at[H:L, 0:H].set(p["wir"])            # r_sum
    wg = wg.at[0:H, L:L + H].set(p["whz"]).at[H:L, L:L + H].set(p["wiz"])    # z_sum
    wg = wg.at[H:L, 2 * L:2 * L + H].set(p["win"])                           # gi_n
    wg = wg.at[0:H, 3 * L:3 * L + H].set(p["whn"])                           # gh_n
    wh = jnp.zeros((L, L), jnp.float32)
    wh = wh.at[0:H, 0:O].set(p["wp"]).at[0:H, O:O + 1].set(p["wv"])          # heads

    w_pack = jnp.concatenate([w1, w2, wg, wh], axis=1).astype(jnp.bfloat16)  # (128,896)

    bias = jnp.zeros((8, L), jnp.float32)
    bias = bias.at[0, 0:H].set(p["b1"][0])
    bias = bias.at[1, H:L].set(p["b2"][0])                 # h2 lives in upper lanes
    bias = bias.at[2, 0:H].set(p["bir"][0] + p["bhr"][0])  # exact fold (r gate)
    bias = bias.at[3, 0:H].set(p["biz"][0] + p["bhz"][0])  # exact fold (z gate)
    bias = bias.at[4, 0:H].set(p["bin"][0])
    bias = bias.at[5, 0:H].set(p["bhn"][0])
    bias = bias.at[6, 0:O].set(p["bp"][0])
    bias = bias.at[6, O].set(p["bv"][0, 0])
    return {"w_pack": w_pack, "bias": bias}


def reference_forward(x, hx, p, matmul_dtype=jnp.float32):
    """Pure-JAX reference of GRUPolicy.forward (batched branch).  With
    matmul_dtype=bfloat16 it mirrors the kernel's operand precision exactly."""
    def mm(a, w):
        return jnp.dot(a.astype(matmul_dtype), w.astype(matmul_dtype),
                       preferred_element_type=jnp.float32)
    h = jnp.maximum(mm(x, p["w1"]) + p["b1"], 0.0)
    h = jnp.maximum(mm(h, p["w2"]) + p["b2"], 0.0)
    r = jax.nn.sigmoid(mm(h, p["wir"]) + p["bir"] + mm(hx, p["whr"]) + p["bhr"])
    z = jax.nn.sigmoid(mm(h, p["wiz"]) + p["biz"] + mm(hx, p["whz"]) + p["bhz"])
    n = jnp.tanh(mm(h, p["win"]) + p["bin"] + r * (mm(hx, p["whn"]) + p["bhn"]))
    h_new = (1.0 - z) * n + z * hx
    return mm(h_new, p["wp"]) + p["bp"], mm(h_new, p["wv"]) + p["bv"], h_new


if __name__ == "__main__":
    B, T = 4, 6
    INPUT_SIZE, OUTPUT_SIZE = 32, 16
    HIDDEN = GRU_HIDDEN = 64

    key = jax.random.PRNGKey(0)
    kx, kh, kp, ks = jax.random.split(key, 4)

    x = jax.random.normal(kx, (B, INPUT_SIZE), dtype=jnp.float32)
    hx = jax.random.normal(kh, (B, GRU_HIDDEN), dtype=jnp.float32)
    x_seq = jax.random.normal(ks, (T, B, INPUT_SIZE), dtype=jnp.float32)

    params = init_params(kp, INPUT_SIZE, OUTPUT_SIZE, HIDDEN, GRU_HIDDEN)
    packed = pack_params(params)   # one-time packing, outside the hot path

    # --- single step (matches GRUPolicy.forward) ---
    policy, value, hx_out = gru_policy_forward(x, hx, packed, OUTPUT_SIZE)
    jax.block_until_ready((policy, value, hx_out))
    assert policy.shape == (B, OUTPUT_SIZE)
    assert value.shape == (B, 1)
    assert hx_out.shape == (B, GRU_HIDDEN)

    # matched-precision reference (bf16 matmul operands, f32 accumulation)
    rp, rv, rh = reference_forward(x, hx, params, jnp.bfloat16)
    assert jnp.allclose(policy, rp, atol=1e-3, rtol=1e-3)
    assert jnp.allclose(value, rv, atol=1e-3, rtol=1e-3)
    assert jnp.allclose(hx_out, rh, atol=1e-3, rtol=1e-3)

    # full-f32 reference (semantic check; tolerance relaxed for bf16 operands)
    fp, fv, fh = reference_forward(x, hx, params, jnp.float32)
    assert jnp.allclose(policy, fp, atol=5e-2, rtol=5e-2)
    assert jnp.allclose(value, fv, atol=5e-2, rtol=5e-2)
    assert jnp.allclose(hx_out, fh, atol=5e-2, rtol=5e-2)

    # --- T-step rollout: one pallas_call, weights resident, hx carried in VMEM ---
    pol_seq, val_seq, hx_seq = gru_policy_forward_seq(x_seq, hx, packed, OUTPUT_SIZE)
    jax.block_until_ready((pol_seq, val_seq, hx_seq))
    h = hx
    for t in range(T):
        rp, rv, h = reference_forward(x_seq[t], h, params, jnp.bfloat16)
        assert jnp.allclose(pol_seq[t], rp, atol=1e-3, rtol=1e-3)
        assert jnp.allclose(val_seq[t], rv, atol=1e-3, rtol=1e-3)
    assert jnp.allclose(hx_seq, h, atol=1e-3, rtol=1e-3)

    print("KERNEL_OK")
</pallas_src>

<mosaic_0001>
module attributes {stable_mosaic.version = 11 : i64} {
  func.func @_gru_policy_kernel(%arg0: i32, %arg1: memref<1x8x128xf32, #tpu.memory_space<vmem>>, %arg2: memref<8x128xf32, #tpu.memory_space<vmem>>, %arg3: memref<128x896xbf16, #tpu.memory_space<vmem>>, %arg4: memref<8x128xf32, #tpu.memory_space<vmem>>, %arg5: memref<1x8x256xf32, #tpu.memory_space<vmem>>, %arg6: memref<8x128xf32, #tpu.memory_space<vmem>>) attributes {dimension_semantics = [#tpu.dimension_semantics<arbitrary>], iteration_bounds = array<i64: 1>, scalar_prefetch = 0 : i64, scratch_operands = 1 : i64, tpu.core_type = #tpu.core_type<tc>, window_params = [{transform_indices = @transform_0, window_bounds = array<i64: 1, 8, 128>}, {pipeline_mode = #tpu.pipeline_mode<synchronous>, transform_indices = @transform_1, window_bounds = array<i64: 8, 128>}, {pipeline_mode = #tpu.pipeline_mode<synchronous>, transform_indices = @transform_2, window_bounds = array<i64: 128, 896>}, {pipeline_mode = #tpu.pipeline_mode<synchronous>, transform_indices = @transform_3, window_bounds = array<i64: 8, 128>}, {transform_indices = @transform_4, window_bounds = array<i64: 1, 8, 256>}]} {
    %c0_i32 = arith.constant 0 : i32
    %0 = arith.cmpi eq, %arg0, %c0_i32 : i32
    %1 = arith.extui %0 : i1 to i32
    %c0_i32_0 = arith.constant 0 : i32
    %2 = arith.cmpi ne, %1, %c0_i32_0 : i32
    scf.if %2 {
      %c0_31 = arith.constant 0 : index
      %c0_32 = arith.constant 0 : index
      %71 = vector.load %arg2[%c0_31, %c0_32] : memref<8x128xf32, #tpu.memory_space<vmem>>, vector<8x128xf32>
      %c0_33 = arith.constant 0 : index
      %c0_34 = arith.constant 0 : index
      %72 = vector.load %arg6[%c0_33, %c0_34] : memref<8x128xf32, #tpu.memory_space<vmem>>, vector<8x128xf32>
      tpu.vector_store %arg6[%c0_33, %c0_34], %71 {strides = array<i32>} : memref<8x128xf32, #tpu.memory_space<vmem>>, vector<8x128xf32>,
    } else {
    }
    %c0 = arith.constant 0 : index
    %c0_1 = arith.constant 0 : index
    %3 = vector.load %arg6[%c0, %c0_1] : memref<8x128xf32, #tpu.memory_space<vmem>>, vector<8x128xf32>
    %c0_2 = arith.constant 0 : index
    %c0_3 = arith.constant 0 : index
    %c0_4 = arith.constant 0 : index
    %4 = vector.load %arg1[%c0_2, %c0_3, %c0_4] : memref<1x8x128xf32, #tpu.memory_space<vmem>>, vector<1x8x128xf32>
    %5 = vector.shape_cast %4 : vector<1x8x128xf32> to vector<8x128xf32>
    %6 = arith.truncf %5 : vector<8x128xf32> to vector<8x128xbf16>
    %c0_5 = arith.constant 0 : index
    %c0_6 = arith.constant 0 : index
    %7 = vector.load %arg3[%c0_5, %c0_6] : memref<128x896xbf16, #tpu.memory_space<vmem>>, vector<128x128xbf16>
    %cst = arith.constant dense<0.000000e+00> : vector<8x128xf32>
    %8 = tpu.matmul %6, %7, %cst {dimension_numbers = #tpu.dot_dimension_numbers<[1], [0], [0], [1], [0, 0, 1, 1], [], []>} : vector<8x128xbf16>, vector<128x128xbf16>, vector<8x128xf32> -> vector<8x128xf32>
    %c0_7 = arith.constant 0 : index
    %c0_8 = arith.constant 0 : index
    %9 = vector.load %arg4[%c0_7, %c0_8] : memref<8x128xf32, #tpu.memory_space<vmem>>, vector<1x128xf32>
    %10 = vector.broadcast %9 : vector<1x128xf32> to vector<8x128xf32>
    %11 = arith.addf %8, %10 : vector<8x128xf32>
    %cst_9 = arith.constant 0.000000e+00 : f32
    %12 = vector.broadcast %cst_9 : f32 to vector<8x128xf32>
    %13 = arith.maximumf %11, %12 : vector<8x128xf32>
    %14 = arith.truncf %13 : vector<8x128xf32> to vector<8x128xbf16>
    %c0_10 = arith.constant 0 : index
    %c128 = arith.constant 128 : index
    %15 = vector.load %arg3[%c0_10, %c128] : memref<128x896xbf16, #tpu.memory_space<vmem>>, vector<128x128xbf16>
    %cst_11 = arith.constant dense<0.000000e+00> : vector<8x128xf32>
    %16 = tpu.matmul %14, %15, %cst_11 {dimension_numbers = #tpu.dot_dimension_numbers<[1], [0], [0], [1], [0, 0, 1, 1], [], []>} : vector<8x128xbf16>, vector<128x128xbf16>, vector<8x128xf32> -> vector<8x128xf32>
    %c1 = arith.constant 1 : index
    %c0_12 = arith.constant 0 : index
    %17 = vector.load %arg4[%c1, %c0_12] : memref<8x128xf32, #tpu.memory_space<vmem>>, vector<1x128xf32>
    %18 = vector.broadcast %17 : vector<1x128xf32> to vector<8x128xf32>
    %19 = arith.addf %16, %18 : vector<8x128xf32>
    %cst_13 = arith.constant 0.000000e+00 : f32
    %20 = vector.broadcast %cst_13 : f32 to vector<8x128xf32>
    %21 = arith.maximumf %19, %20 : vector<8x128xf32>
    %22 = arith.addf %21, %3 : vector<8x128xf32>
    %23 = arith.truncf %22 : vector<8x128xf32> to vector<8x128xbf16>
    %c0_14 = arith.constant 0 : index
    %c256 = arith.constant 256 : index
    %24 = vector.load %arg3[%c0_14, %c256] : memref<128x896xbf16, #tpu.memory_space<vmem>>, vector<128x512xbf16>
    %cst_15 = arith.constant dense<0.000000e+00> : vector<8x512xf32>
    %25 = tpu.matmul %23, %24, %cst_15 {dimension_numbers = #tpu.dot_dimension_numbers<[1], [0], [0], [1], [0, 0, 1, 1], [], []>} : vector<8x128xbf16>, vector<128x512xbf16>, vector<8x512xf32> -> vector<8x512xf32>
    %26 = vector.extract_strided_slice %25 {offsets = [0, 0], sizes = [8, 128], strides = [1, 1]} : vector<8x512xf32> to vector<8x128xf32>
    %c2 = arith.constant 2 : index
    %c0_16 = arith.constant 0 : index
    %27 = vector.load %arg4[%c2, %c0_16] : memref<8x128xf32, #tpu.memory_space<vmem>>, vector<1x128xf32>
    %28 = vector.broadcast %27 : vector<1x128xf32> to vector<8x128xf32>
    %29 = arith.addf %26, %28 : vector<8x128xf32>
    %30 = arith.negf %29 : vector<8x128xf32>
    %31 = math.exp %30 : vector<8x128xf32>
    %cst_17 = arith.constant 1.000000e+00 : f32
    %32 = vector.broadcast %cst_17 : f32 to vector<8x128xf32>
    %33 = arith.addf %32, %31 : vector<8x128xf32>
    %34 = arith.divf %32, %33 : vector<8x128xf32>
    %35 = vector.extract_strided_slice %25 {offsets = [0, 128], sizes = [8, 128], strides = [1, 1]} : vector<8x512xf32> to vector<8x128xf32>
    %c3 = arith.constant 3 : index
    %c0_18 = arith.constant 0 : index
    %36 = vector.load %arg4[%c3, %c0_18] : memref<8x128xf32, #tpu.memory_space<vmem>>, vector<1x128xf32>
    %37 = vector.broadcast %36 : vector<1x128xf32> to vector<8x128xf32>
    %38 = arith.addf %35, %37 : vector<8x128xf32>
    %39 = arith.negf %38 : vector<8x128xf32>
    %40 = math.exp %39 : vector<8x128xf32>
    %cst_19 = arith.constant 1.000000e+00 : f32
    %41 = vector.broadcast %cst_19 : f32 to vector<8x128xf32>
    %42 = arith.addf %41, %40 : vector<8x128xf32>
    %43 = arith.divf %41, %42 : vector<8x128xf32>
    %44 = vector.extract_strided_slice %25 {offsets = [0, 256], sizes = [8, 128], strides = [1, 1]} : vector<8x512xf32> to vector<8x128xf32>
    %c4 = arith.constant 4 : index
    %c0_20 = arith.constant 0 : index
    %45 = vector.load %arg4[%c4, %c0_20] : memref<8x128xf32, #tpu.memory_space<vmem>>, vector<1x128xf32>
    %46 = vector.broadcast %45 : vector<1x128xf32> to vector<8x128xf32>
    %47 = arith.addf %44, %46 : vector<8x128xf32>
    %48 = vector.extract_strided_slice %25 {offsets = [0, 384], sizes = [8, 128], strides = [1, 1]} : vector<8x512xf32> to vector<8x128xf32>
    %c5 = arith.constant 5 : index
    %c0_21 = arith.constant 0 : index
    %49 = vector.load %arg4[%c5, %c0_21] : memref<8x128xf32, #tpu.memory_space<vmem>>, vector<1x128xf32>
    %50 = vector.broadcast %49 : vector<1x128xf32> to vector<8x128xf32>
    %51 = arith.addf %48, %50 : vector<8x128xf32>
    %52 = arith.mulf %34, %51 : vector<8x128xf32>
    %53 = arith.addf %47, %52 : vector<8x128xf32>
    %54 = math.tanh %53 : vector<8x128xf32>
    %cst_22 = arith.constant 1.000000e+00 : f32
    %55 = vector.broadcast %cst_22 : f32 to vector<8x128xf32>
    %56 = arith.subf %55, %43 : vector<8x128xf32>
    %57 = arith.mulf %56, %54 : vector<8x128xf32>
    %58 = arith.mulf %43, %3 : vector<8x128xf32>
    %59 = arith.addf %57, %58 : vector<8x128xf32>
    %60 = arith.truncf %59 : vector<8x128xf32> to vector<8x128xbf16>
    %c0_23 = arith.constant 0 : index
    %c768 = arith.constant 768 : index
    %61 = vector.load %arg3[%c0_23, %c768] : memref<128x896xbf16, #tpu.memory_space<vmem>>, vector<128x128xbf16>
    %cst_24 = arith.constant dense<0.000000e+00> : vector<8x128xf32>
    %62 = tpu.matmul %60, %61, %cst_24 {dimension_numbers = #tpu.dot_dimension_numbers<[1], [0], [0], [1], [0, 0, 1, 1], [], []>} : vector<8x128xbf16>, vector<128x128xbf16>, vector<8x128xf32> -> vector<8x128xf32>
    %c6 = arith.constant 6 : index
    %c0_25 = arith.constant 0 : index
    %63 = vector.load %arg4[%c6, %c0_25] : memref<8x128xf32, #tpu.memory_space<vmem>>, vector<1x128xf32>
    %64 = vector.broadcast %63 : vector<1x128xf32> to vector<8x128xf32>
    %65 = arith.addf %62, %64 : vector<8x128xf32>
    %c0_26 = arith.constant 0 : index
    %c0_27 = arith.constant 0 : index
    %66 = vector.load %arg6[%c0_26, %c0_27] : memref<8x128xf32, #tpu.memory_space<vmem>>, vector<8x128xf32>
    tpu.vector_store %arg6[%c0_26, %c0_27], %59 {strides = array<i32>} : memref<8x128xf32, #tpu.memory_space<vmem>>, vector<8x128xf32>,
    %67 = tpu.concatenate %59, %65 in 1 : vector<8x128xf32>, vector<8x128xf32> -> vector<8x256xf32>
    %c0_28 = arith.constant 0 : index
    %c0_29 = arith.constant 0 : index
    %c0_30 = arith.constant 0 : index
    %68 = vector.load %arg5[%c0_28, %c0_29, %c0_30] : memref<1x8x256xf32, #tpu.memory_space<vmem>>, vector<1x8x256xf32>
    %69 = vector.shape_cast %68 : vector<1x8x256xf32> to vector<8x256xf32>
    %70 = vector.shape_cast %67 : vector<8x256xf32> to vector<1x8x256xf32>
    tpu.vector_store %arg5[%c0_28, %c0_29, %c0_30], %70 {strides = array<i32>} : memref<1x8x256xf32, #tpu.memory_space<vmem>>, vector<1x8x256xf32>,
    return
  }
  func.func @transform_0(%arg0: i32) -> (i32, i32, i32) {
    %c0_i32 = arith.constant 0 : i32
    %c0_i32_0 = arith.constant 0 : i32
    %c0_i32_1 = arith.constant 0 : i32
    return %arg0, %c0_i32, %c0_i32_0 : i32, i32, i32
  }
  func.func @transform_1(%arg0: i32) -> (i32, i32) {
    %c0_i32 = arith.constant 0 : i32
    %c0_i32_0 = arith.constant 0 : i32
    %c0_i32_1 = arith.constant 0 : i32
    return %c0_i32, %c0_i32_0 : i32, i32
  }
  func.func @transform_2(%arg0: i32) -> (i32, i32) {
    %c0_i32 = arith.constant 0 : i32
    %c0_i32_0 = arith.constant 0 : i32
    %c0_i32_1 = arith.constant 0 : i32
    return %c0_i32, %c0_i32_0 : i32, i32
  }
  func.func @transform_3(%arg0: i32) -> (i32, i32) {
    %c0_i32 = arith.constant 0 : i32
    %c0_i32_0 = arith.constant 0 : i32
    %c0_i32_1 = arith.constant 0 : i32
    return %c0_i32, %c0_i32_0 : i32, i32
  }
  func.func @transform_4(%arg0: i32) -> (i32, i32, i32) {
    %c0_i32 = arith.constant 0 : i32
    %c0_i32_0 = arith.constant 0 : i32
    %c0_i32_1 = arith.constant 0 : i32
    return %arg0, %c0_i32, %c0_i32_0 : i32, i32, i32
  }
}

</mosaic_0001>

<llo_original>
// kernel: gru_policy_forward_seq.1
$region0: #{gru_policy_forward_seq.1}
  #allocation0 [shape = 'u32[]', space=smem, size = 0x4, offset = 0x4, fixed_abs, tag = 'smem constant byte address 0x4 - core index']
  #allocation1 [shape = 'u32[144,128]{1,0:T(1,128)}', space=vmem, size = 0x12000, scoped, tag = 'internal scratch']
  #allocation2 [shape = 'f32[8,128]{1,0:T(8,128)}', space=vmem, size = 0x1000, scoped, tag = 'scratch operand']
  %s0 = inlined_call_operand.vmem [shape: f32[1,8,128], index: 0, kind: input, shape index: {}]
  %s1 = inlined_call_operand.vmem [shape: f32[8,128], index: 1, kind: input, shape index: {}]
  %s2 = inlined_call_operand.hbm [shape: bf16[128,896], index: 2, kind: input, shape index: {}]
  %s3 = inlined_call_operand.vmem [shape: f32[8,128], index: 3, kind: input, shape index: {}]
  %s4 = inlined_call_operand.vmem [shape: f32[1,8,256], index: 4, kind: output, shape index: {}]
  %s5 = sld [smem:[#allocation0]]
  $region34: #{gru_policy_forward_seq.1} parent=0
    _
  %s7 = ssub.s32 1, %s5
  %s8 = scalar_select 0, %s7, %s5
  $region1: #{gru_policy_forward_seq.1} parent=0
    #allocation3 [shape = 'u8[229376]{0}', space=vmem, size = 0x38000, scoped, tag = 'input window, operand 2, single buffered']
    #allocation4 [shape = 's32[1]{0}', space=sflag, size = 0x4, scoped, tag = 'scoped memory for gru_policy_forward_seq.1']
    %9 = vsyncpa [#allocation4], 0
    // Predicated region
    $region2: #{gru_policy_forward_seq.1} parent=1 // pred_check
      _
    $region3: #{gru_policy_forward_seq.1} parent=1 // pred_check_branch
      %11 = sbr.rel (0) target = $region5
    $region4: #{gru_policy_forward_seq.1} parent=1 // pred_region
      _
    $region5: #{gru_policy_forward_seq.1} parent=1 // pred_fallthru
      _
    // Predicated region
    $region6: #{gru_policy_forward_seq.1} parent=1 // pred_check
      _
    $region7: #{gru_policy_forward_seq.1} parent=1 // pred_check_branch
      %13 = sbr.rel (0) target = $region9
    $region8: #{gru_policy_forward_seq.1} parent=1 // pred_region
      _
    $region9: #{gru_policy_forward_seq.1} parent=1 // pred_fallthru
      _
    // Predicated region
    $region10: #{gru_policy_forward_seq.1} parent=1 // pred_check
      _
    $region11: #{gru_policy_forward_seq.1} parent=1 // pred_check_branch
      %15 = sbr.rel (0) target = $region13
    $region12: #{gru_policy_forward_seq.1} parent=1 // pred_region
      %s17 = ssub.s32 7168, 7168
      %18 = vsyncadd [#allocation4], %s17
      %s19 = sshll.u32 [#allocation3], 4
      %s20 = int_to_ptr.vmem [resolvable:$true] %s19
      %25 = dma.hbm_to_vmem [thread:$0]  %s2, 7168, %s20, [#allocation4], 448, 448, 28
    $region13: #{gru_policy_forward_seq.1} parent=1 // pred_fallthru
      _
    // Predicated region
    $region14: #{gru_policy_forward_seq.1} parent=1 // pred_check
      _
    $region15: #{gru_policy_forward_seq.1} parent=1 // pred_check_branch
      %27 = sbr.rel (0) target = $region17
    $region16: #{gru_policy_forward_seq.1} parent=1 // pred_region
      _
    $region17: #{gru_policy_forward_seq.1} parent=1 // pred_fallthru
      _
    // Predicated region
    $region18: #{gru_policy_forward_seq.1} parent=1 // pred_check
      _
    $region19: #{gru_policy_forward_seq.1} parent=1 // pred_check_branch
      %29 = sbr.rel (0) target = $region21
    $region20: #{gru_policy_forward_seq.1} parent=1 // pred_region
      %30 = dma.done [#allocation4], 7168
    $region21: #{gru_policy_forward_seq.1} parent=1 // pred_fallthru
      _
    %p32 = scmp.eq.s32.totalorder 0, 0
    // Predicated region
    $region22: #{gru_policy_forward_seq.1} parent=1 // pred_check
      %p33 = pneg %p32
    $region23: #{gru_policy_forward_seq.1} parent=1 // pred_check_branch
      %35 = sbr.rel (%p33) target = $region25
    $region24: #{gru_policy_forward_seq.1} parent=1 // pred_region
      %v36 = vld [vmem:[%s1] sm:$0xff]
      %37 = vst [vmem:[#allocation2] sm:$0xff] %v36
    $region25: #{gru_policy_forward_seq.1} parent=1 // pred_fallthru
      _
    %v38 = vld [vmem:[#allocation2] sm:$0xff]
    %v39 = vld [vmem:[%s0] sm:$0xff]
    %v40 = vpack.c.bf16 %v39, %v39
    %v41 = vld [vmem:[#allocation3] sm:$0xf]
    %v42 = vld [vmem:[#allocation3 + $0x1c] sm:$0xf]
    %v43 = vld [vmem:[#allocation3 + $0x38] sm:$0xf]
    %v44 = vld [vmem:[#allocation3 + $0x54] sm:$0xf]
    %v45 = vld [vmem:[#allocation3 + $0x70] sm:$0xf]
    %v46 = vld [vmem:[#allocation3 + $0x8c] sm:$0xf]
    %v47 = vld [vmem:[#allocation3 + $0xa8] sm:$0xf]
    %v48 = vld [vmem:[#allocation3 + $0xc4] sm:$0xf]
    %v49 = vld [vmem:[#allocation3 + $0xe0] sm:$0xf]
    %v50 = vld [vmem:[#allocation3 + $0xfc] sm:$0xf]
    %v51 = vld [vmem:[#allocation3 + $0x118] sm:$0xf]
    %v52 = vld [vmem:[#allocation3 + $0x134] sm:$0xf]
    %v53 = vld [vmem:[#allocation3 + $0x150] sm:$0xf]
    %v54 = vld [vmem:[#allocation3 + $0x16c] sm:$0xf]
    %v55 = vld [vmem:[#allocation3 + $0x188] sm:$0xf]
    %v56 = vld [vmem:[#allocation3 + $0x1a4] sm:$0xf]
    %v57 = vld [vmem:[%s3] sm:$0x1]
    %v58 = vlaneseq
    %v59 = vshrl.u32 %v58, 7
    %v60 = vsub.s32 0, %v59
    %v61 = vrot.slane %v57, %v60
    %v78 = vunpack.c.l.b16 %v41
    %v79 = vunpack.c.l.b16 %v42
    %v80 = vunpack.c.l.b16 %v43
    %v81 = vunpack.c.l.b16 %v44
    %v82 = vunpack.c.l.b16 %v45
    %v83 = vunpack.c.l.b16 %v46
    %v84 = vunpack.c.l.b16 %v47
    %v85 = vunpack.c.l.b16 %v48
    %v86 = vunpack.c.l.b16 %v49
    %v87 = vunpack.c.l.b16 %v50
    %v88 = vunpack.c.l.b16 %v51
    %v89 = vunpack.c.l.b16 %v52
    %v90 = vunpack.c.l.b16 %v53
    %v91 = vunpack.c.l.b16 %v54
    %v92 = vunpack.c.l.b16 %v55
    %v93 = vunpack.c.l.b16 %v56
    %v94 = vpack.c.b16 %v79, %v78
    %v95 = vpack.c.b16 %v81, %v80
    %v96 = vpack.c.b16 %v83, %v82
    %v97 = vpack.c.b16 %v85, %v84
    %v98 = vpack.c.b16 %v87, %v86
    %v99 = vpack.c.b16 %v89, %v88
    %v100 = vpack.c.b16 %v91, %v90
    %v101 = vpack.c.b16 %v93, %v92
    %110 = vmatprep.subr.bf16.mxu0 0
    %111 = vmatpush1.bf16.msra.mxu0 %v101
    %112 = vmatprep.subr.bf16.mxu0 0
    %113 = vmatpush1.bf16.msra.mxu0 %v100
    %114 = vmatprep.subr.bf16.mxu0 0
    %115 = vmatpush1.bf16.msra.mxu0 %v99
    %116 = vmatprep.subr.bf16.mxu0 0
    %117 = vmatpush1.bf16.msra.mxu0 %v98
    %118 = vmatprep.subr.bf16.mxu0 0
    %119 = vmatpush1.bf16.msra.mxu0 %v97
    %120 = vmatprep.subr.bf16.mxu0 0
    %121 = vmatpush1.bf16.msra.mxu0 %v96
    %122 = vmatprep.subr.bf16.mxu0 0
    %123 = vmatpush1.bf16.msra.mxu0 %v95
    %124 = vmatprep.subr.bf16.mxu0 0
    %125 = vmatpush1.bf16.msra.mxu0 %v94
    %126 = vmatprep.subr.bf16.mxu0 0
    %127 = vmatpush2.bf16.msra.mxu0 0
    %128 = vmatprep.subr.bf16.mxu0 0
    %129 = vmatpush2.bf16.msra.mxu0 0
    %130 = vmatprep.subr.bf16.mxu0 0
    %131 = vmatpush2.bf16.msra.mxu0 0
    %132 = vmatprep.subr.bf16.mxu0 0
    %133 = vmatpush2.bf16.msra.mxu0 0
    %134 = vmatprep.subr.bf16.mxu0 0
    %135 = vmatpush2.bf16.msra.mxu0 0
    %136 = vmatprep.subr.bf16.mxu0 0
    %137 = vmatpush2.bf16.msra.mxu0 0
    %138 = vmatprep.subr.bf16.mxu0 0
    %139 = vmatpush2.bf16.msra.mxu0 0
    %140 = vmatprep.subr.bf16.mxu0 0
    %141 = vmatpush2.bf16.msra.mxu0 0
    %142 = vmatprep.mubr.bf16.mxu0 0
    %143 = vmatmul.mubr.bf16.gmra.mxu0 %v40
    %v144 = vpop.f32.mrf.mxu0
    %v145 = vadd.f32 %v61, %v144
    %v146 = vpop.f32.mrf.mxu0
    %v147 = vpop.f32.mrf.mxu0
    %v148 = vpop.f32.mrf.mxu0
    %149 = vdwg.mxu0
    %v150 = vmax.f32 %v145, 0.0
    %v151 = vpack.c.bf16 %v150, %v150
    %v152 = vld [vmem:[#allocation3 + $0x4] sm:$0xf]
    %v153 = vld [vmem:[#allocation3 + $0x20] sm:$0xf]
    %v154 = vld [vmem:[#allocation3 + $0x3c] sm:$0xf]
    %v155 = vld [vmem:[#allocation3 + $0x58] sm:$0xf]
    %v156 = vld [vmem:[#allocation3 + $0x74] sm:$0xf]
    %v157 = vld [vmem:[#allocation3 + $0x90] sm:$0xf]
    %v158 = vld [vmem:[#allocation3 + $0xac] sm:$0xf]
    %v159 = vld [vmem:[#allocation3 + $0xc8] sm:$0xf]
    %v160 = vld [vmem:[#allocation3 + $0xe4] sm:$0xf]
    %v161 = vld [vmem:[#allocation3 + $0x100] sm:$0xf]
    %v162 = vld [vmem:[#allocation3 + $0x11c] sm:$0xf]
    %v163 = vld [vmem:[#allocation3 + $0x138] sm:$0xf]
    %v164 = vld [vmem:[#allocation3 + $0x154] sm:$0xf]
    %v165 = vld [vmem:[#allocation3 + $0x170] sm:$0xf]
    %v166 = vld [vmem:[#allocation3 + $0x18c] sm:$0xf]
    %v167 = vld [vmem:[#allocation3 + $0x1a8] sm:$0xf]
    %v168 = vld [vmem:[%s3 + $0x1] sm:$0x1]
    %v169 = vlaneseq
    %v170 = vshrl.u32 %v169, 7
    %v171 = vsub.s32 0, %v170
    %v172 = vrot.slane %v168, %v171
    %v189 = vunpack.c.l.b16 %v152
    %v190 = vunpack.c.l.b16 %v153
    %v191 = vunpack.c.l.b16 %v154
    %v192 = vunpack.c.l.b16 %v155
    %v193 = vunpack.c.l.b16 %v156
    %v194 = vunpack.c.l.b16 %v157
    %v195 = vunpack.c.l.b16 %v158
    %v196 = vunpack.c.l.b16 %v159
    %v197 = vunpack.c.l.b16 %v160
    %v198 = vunpack.c.l.b16 %v161
    %v199 = vunpack.c.l.b16 %v162
    %v200 = vunpack.c.l.b16 %v163
    %v201 = vunpack.c.l.b16 %v164
    %v202 = vunpack.c.l.b16 %v165
    %v203 = vunpack.c.l.b16 %v166
    %v204 = vunpack.c.l.b16 %v167
    %v205 = vpack.c.b16 %v190, %v189
    %v206 = vpack.c.b16 %v192, %v191
    %v207 = vpack.c.b16 %v194, %v193
    %v208 = vpack.c.b16 %v196, %v195
    %v209 = vpack.c.b16 %v198, %v197
    %v210 = vpack.c.b16 %v200, %v199
    %v211 = vpack.c.b16 %v202, %v201
    %v212 = vpack.c.b16 %v204, %v203
    %221 = vmatprep.subr.bf16.mxu0 0
    %222 = vmatpush1.bf16.msra.mxu0 %v212
    %223 = vmatprep.subr.bf16.mxu0 0
    %224 = vmatpush1.bf16.msra.mxu0 %v211
    %225 = vmatprep.subr.bf16.mxu0 0
    %226 = vmatpush1.bf16.msra.mxu0 %v210
    %227 = vmatprep.subr.bf16.mxu0 0
    %228 = vmatpush1.bf16.msra.mxu0 %v209
    %229 = vmatprep.subr.bf16.mxu0 0
    %230 = vmatpush1.bf16.msra.mxu0 %v208
    %231 = vmatprep.subr.bf16.mxu0 0
    %232 = vmatpush1.bf16.msra.mxu0 %v207
    %233 = vmatprep.subr.bf16.mxu0 0
    %234 = vmatpush1.bf16.msra.mxu0 %v206
    %235 = vmatprep.subr.bf16.mxu0 0
    %236 = vmatpush1.bf16.msra.mxu0 %v205
    %237 = vmatprep.subr.bf16.mxu0 0
    %238 = vmatpush2.bf16.msra.mxu0 0
    %239 = vmatprep.subr.bf16.mxu0 0
    %240 = vmatpush2.bf16.msra.mxu0 0
    %241 = vmatprep.subr.bf16.mxu0 0
    %242 = vmatpush2.bf16.msra.mxu0 0
    %243 = vmatprep.subr.bf16.mxu0 0
    %244 = vmatpush2.bf16.msra.mxu0 0
    %245 = vmatprep.subr.bf16.mxu0 0
    %246 = vmatpush2.bf16.msra.mxu0 0
    %247 = vmatprep.subr.bf16.mxu0 0
    %248 = vmatpush2.bf16.msra.mxu0 0
    %249 = vmatprep.subr.bf16.mxu0 0
    %250 = vmatpush2.bf16.msra.mxu0 0
    %251 = vmatprep.subr.bf16.mxu0 0
    %252 = vmatpush2.bf16.msra.mxu0 0
    %253 = vmatprep.mubr.bf16.mxu0 0
    %254 = vmatmul.mubr.bf16.gmra.mxu0 %v151
    %v255 = vpop.f32.mrf.mxu0
    %v256 = vadd.f32 %v172, %v255
    %v257 = vpop.f32.mrf.mxu0
    %v258 = vpop.f32.mrf.mxu0
    %v259 = vpop.f32.mrf.mxu0
    %260 = vdwg.mxu0
    %v261 = vmax.f32 %v256, 0.0
    %v262 = vadd.f32 %v261, %v38
    %v263 = vpack.c.bf16 %v262, %v262
    %v264 = vld [vmem:[#allocation3 + $0x8] sm:$0xff]
    %v265 = vld [vmem:[#allocation3 + $0x10] sm:$0xff]
    %v266 = vld [vmem:[#allocation3 + $0x24] sm:$0xff]
    %v267 = vld [vmem:[#allocation3 + $0x2c] sm:$0xff]
    %v268 = vld [vmem:[#allocation3 + $0x40] sm:$0xff]
    %v269 = vld [vmem:[#allocation3 + $0x48] sm:$0xff]
    %v270 = vld [vmem:[#allocation3 + $0x5c] sm:$0xff]
    %v271 = vld [vmem:[#allocation3 + $0x64] sm:$0xff]
    %v272 = vld [vmem:[#allocation3 + $0x78] sm:$0xff]
    %v273 = vld [vmem:[#allocation3 + $0x80] sm:$0xff]
    %v274 = vld [vmem:[#allocation3 + $0x94] sm:$0xff]
    %v275 = vld [vmem:[#allocation3 + $0x9c] sm:$0xff]
    %v276 = vld [vmem:[#allocation3 + $0xb0] sm:$0xff]
    %v277 = vld [vmem:[#allocation3 + $0xb8] sm:$0xff]
    %v278 = vld [vmem:[#allocation3 + $0xcc] sm:$0xff]
    %v279 = vld [vmem:[#allocation3 + $0xd4] sm:$0xff]
    %v280 = vld [vmem:[#allocation3 + $0xe8] sm:$0xff]
    %v281 = vld [vmem:[#allocation3 + $0xf0] sm:$0xff]
    %v282 = vld [vmem:[#allocation3 + $0x104] sm:$0xff]
    %v283 = vld [vmem:[#allocation3 + $0x10c] sm:$0xff]
    %v284 = vld [vmem:[#allocation3 + $0x120] sm:$0xff]
    %v285 = vld [vmem:[#allocation3 + $0x128] sm:$0xff]
    %v286 = vld [vmem:[#allocation3 + $0x13c] sm:$0xff]
    %v287 = vld [vmem:[#allocation3 + $0x144] sm:$0xff]
    %v288 = vld [vmem:[#allocation3 + $0x158] sm:$0xff]
    %v289 = vld [vmem:[#allocation3 + $0x160] sm:$0xff]
    %v290 = vld [vmem:[#allocation3 + $0x174] sm:$0xff]
    %v291 = vld [vmem:[#allocation3 + $0x17c] sm:$0xff]
    %v292 = vld [vmem:[#allocation3 + $0x190] sm:$0xff]
    %v293 = vld [vmem:[#allocation3 + $0x198] sm:$0xff]
    %v294 = vld [vmem:[#allocation3 + $0x1ac] sm:$0xff]
    %v295 = vld [vmem:[#allocation3 + $0x1b4] sm:$0xff]
    %v328 = vunpack.c.l.b16 %v264
    %v329 = vunpack.c.h.b16 %v264
    %v330 = vunpack.c.l.b16 %v265
    %v331 = vunpack.c.h.b16 %v265
    %v332 = vunpack.c.l.b16 %v266
    %v333 = vunpack.c.h.b16 %v266
    %v334 = vunpack.c.l.b16 %v267
    %v335 = vunpack.c.h.b16 %v267
    %v336 = vunpack.c.l.b16 %v268
    %v337 = vunpack.c.h.b16 %v268
    %v338 = vunpack.c.l.b16 %v269
    %v339 = vunpack.c.h.b16 %v269
    %v340 = vunpack.c.l.b16 %v270
    %v341 = vunpack.c.h.b16 %v270
    %v342 = vunpack.c.l.b16 %v271
    %v343 = vunpack.c.h.b16 %v271
    %v344 = vunpack.c.l.b16 %v272
    %v345 = vunpack.c.h.b16 %v272
    %v346 = vunpack.c.l.b16 %v273
    %v347 = vunpack.c.h.b16 %v273
    %v348 = vunpack.c.l.b16 %v274
    %v349 = vunpack.c.h.b16 %v274
    %v350 = vunpack.c.l.b16 %v275
    %v351 = vunpack.c.h.b16 %v275
    %v352 = vunpack.c.l.b16 %v276
    %v353 = vunpack.c.h.b16 %v276
    %v354 = vunpack.c.l.b16 %v277
    %v355 = vunpack.c.h.b16 %v277
    %v356 = vunpack.c.l.b16 %v278
    %v357 = vunpack.c.h.b16 %v278
    %v358 = vunpack.c.l.b16 %v279
    %v359 = vunpack.c.h.b16 %v279
    %v360 = vunpack.c.l.b16 %v280
    %v361 = vunpack.c.h.b16 %v280
    %v362 = vunpack.c.l.b16 %v281
    %v363 = vunpack.c.h.b16 %v281
    %v364 = vunpack.c.l.b16 %v282
    %v365 = vunpack.c.h.b16 %v282
    %v366 = vunpack.c.l.b16 %v283
    %v367 = vunpack.c.h.b16 %v283
    %v368 = vunpack.c.l.b16 %v284
    %v369 = vunpack.c.h.b16 %v284
    %v370 = vunpack.c.l.b16 %v285
    %v371 = vunpack.c.h.b16 %v285
    %v372 = vunpack.c.l.b16 %v286
    %v373 = vunpack.c.h.b16 %v286
    %v374 = vunpack.c.l.b16 %v287
    %v375 = vunpack.c.h.b16 %v287
    %v376 = vunpack.c.l.b16 %v288
    %v377 = vunpack.c.h.b16 %v288
    %v378 = vunpack.c.l.b16 %v289
    %v379 = vunpack.c.h.b16 %v289
    %v380 = vunpack.c.l.b16 %v290
    %v381 = vunpack.c.h.b16 %v290
    %v382 = vunpack.c.l.b16 %v291
    %v383 = vunpack.c.h.b16 %v291
    %v384 = vunpack.c.l.b16 %v292
    %v385 = vunpack.c.h.b16 %v292
    %v386 = vunpack.c.l.b16 %v293
    %v387 = vunpack.c.h.b16 %v293
    %v388 = vunpack.c.l.b16 %v294
    %v389 = vunpack.c.h.b16 %v294
    %v390 = vunpack.c.l.b16 %v295
    %v391 = vunpack.c.h.b16 %v295
    %v392 = vpack.c.b16 %v332, %v328
    %v393 = vpack.c.b16 %v333, %v329
    %v394 = vpack.c.b16 %v334, %v330
    %v395 = vpack.c.b16 %v335, %v331
    %v396 = vpack.c.b16 %v340, %v336
    %v397 = vpack.c.b16 %v341, %v337
    %v398 = vpack.c.b16 %v342, %v338
    %v399 = vpack.c.b16 %v343, %v339
    %v400 = vpack.c.b16 %v348, %v344
    %v401 = vpack.c.b16 %v349, %v345
    %v402 = vpack.c.b16 %v350, %v346
    %v403 = vpack.c.b16 %v351, %v347
    %v404 = vpack.c.b16 %v356, %v352
    %v405 = vpack.c.b16 %v357, %v353
    %v406 = vpack.c.b16 %v358, %v354
    %v407 = vpack.c.b16 %v359, %v355
    %v408 = vpack.c.b16 %v364, %v360
    %v409 = vpack.c.b16 %v365, %v361
    %v410 = vpack.c.b16 %v366, %v362
    %v411 = vpack.c.b16 %v367, %v363
    %v412 = vpack.c.b16 %v372, %v368
    %v413 = vpack.c.b16 %v373, %v369
    %v414 = vpack.c.b16 %v374, %v370
    %v415 = vpack.c.b16 %v375, %v371
    %v416 = vpack.c.b16 %v380, %v376
    %v417 = vpack.c.b16 %v381, %v377
    %v418 = vpack.c.b16 %v382, %v378
    %v419 = vpack.c.b16 %v383, %v379
    %v420 = vpack.c.b16 %v388, %v384
    %v421 = vpack.c.b16 %v389, %v385
    %v422 = vpack.c.b16 %v390, %v386
    %v423 = vpack.c.b16 %v391, %v387
    %456 = vmatprep.subr.bf16.mxu0 %v421
    %457 = vmatpush1.bf16.msra.mxu0 %v420
    %458 = vmatprep.subr.bf16.mxu0 %v417
    %459 = vmatpush1.bf16.msra.mxu0 %v416
    %460 = vmatprep.subr.bf16.mxu0 %v413
    %461 = vmatpush1.bf16.msra.mxu0 %v412
    %462 = vmatprep.subr.bf16.mxu0 %v409
    %463 = vmatpush1.bf16.msra.mxu0 %v408
    %464 = vmatprep.subr.bf16.mxu0 %v405
    %465 = vmatpush1.bf16.msra.mxu0 %v404
    %466 = vmatprep.subr.bf16.mxu0 %v401
    %467 = vmatpush1.bf16.msra.mxu0 %v400
    %468 = vmatprep.subr.bf16.mxu0 %v397
    %469 = vmatpush1.bf16.msra.mxu0 %v396
    %470 = vmatprep.subr.bf16.mxu0 %v393
    %471 = vmatpush1.bf16.msra.mxu0 %v392
    %472 = vmatprep.subr.bf16.mxu0 0
    %473 = vmatpush2.bf16.msra.mxu0 0
    %474 = vmatprep.subr.bf16.mxu0 0
    %475 = vmatpush2.bf16.msra.mxu0 0
    %476 = vmatprep.subr.bf16.mxu0 0
    %477 = vmatpush2.bf16.msra.mxu0 0
    %478 = vmatprep.subr.bf16.mxu0 0
    %479 = vmatpush2.bf16.msra.mxu0 0
    %480 = vmatprep.subr.bf16.mxu0 0
    %481 = vmatpush2.bf16.msra.mxu0 0
    %482 = vmatprep.subr.bf16.mxu0 0
    %483 = vmatpush2.bf16.msra.mxu0 0
    %484 = vmatprep.subr.bf16.mxu0 0
    %485 = vmatpush2.bf16.msra.mxu0 0
    %486 = vmatprep.subr.bf16.mxu0 0
    %487 = vmatpush2.bf16.msra.mxu0 0
    %488 = vmatprep.mubr.bf16.mxu0 0
    %489 = vmatmul.mubr.bf16.gmra.mxu0 %v263
    %v490 = vpop.f32.mrf.mxu0
    %v491 = vadd.f32 0.0, %v490
    %v492 = vpop.f32.mrf.mxu0
    %v493 = vadd.f32 0.0, %v492
    %v494 = vpop.f32.mrf.mxu0
    %v495 = vpop.f32.mrf.mxu0
    %496 = vdwg.mxu0
    %497 = vmatprep.subr.bf16.mxu0 %v423
    %498 = vmatpush1.bf16.msra.mxu0 %v422
    %499 = vmatprep.subr.bf16.mxu0 %v419
    %500 = vmatpush1.bf16.msra.mxu0 %v418
    %501 = vmatprep.subr.bf16.mxu0 %v415
    %502 = vmatpush1.bf16.msra.mxu0 %v414
    %503 = vmatprep.subr.bf16.mxu0 %v411
    %504 = vmatpush1.bf16.msra.mxu0 %v410
    %505 = vmatprep.subr.bf16.mxu0 %v407
    %506 = vmatpush1.bf16.msra.mxu0 %v406
    %507 = vmatprep.subr.bf16.mxu0 %v403
    %508 = vmatpush1.bf16.msra.mxu0 %v402
    %509 = vmatprep.subr.bf16.mxu0 %v399
    %510 = vmatpush1.bf16.msra.mxu0 %v398
    %511 = vmatprep.subr.bf16.mxu0 %v395
    %512 = vmatpush1.bf16.msra.mxu0 %v394
    %513 = vmatprep.subr.bf16.mxu0 0
    %514 = vmatpush2.bf16.msra.mxu0 0
    %515 = vmatprep.subr.bf16.mxu0 0
    %516 = vmatpush2.bf16.msra.mxu0 0
    %517 = vmatprep.subr.bf16.mxu0 0
    %518 = vmatpush2.bf16.msra.mxu0 0
    %519 = vmatprep.subr.bf16.mxu0 0
    %520 = vmatpush2.bf16.msra.mxu0 0
    %521 = vmatprep.subr.bf16.mxu0 0
    %522 = vmatpush2.bf16.msra.mxu0 0
    %523 = vmatprep.subr.bf16.mxu0 0
    %524 = vmatpush2.bf16.msra.mxu0 0
    %525 = vmatprep.subr.bf16.mxu0 0
    %526 = vmatpush2.bf16.msra.mxu0 0
    %527 = vmatprep.subr.bf16.mxu0 0
    %528 = vmatpush2.bf16.msra.mxu0 0
    %529 = vmatprep.mubr.bf16.mxu0 0
    %530 = vmatmul.mubr.bf16.gmra.mxu0 %v263
    %v531 = vpop.f32.mrf.mxu0
    %v532 = vadd.f32 0.0, %v531
    %v533 = vpop.f32.mrf.mxu0
    %v534 = vadd.f32 0.0, %v533
    %v535 = vpop.f32.mrf.mxu0
    %v536 = vpop.f32.mrf.mxu0
    %537 = vdwg.mxu0
    %v538 = vld [vmem:[%s3 + $0x2] sm:$0x1]
    %v539 = vlaneseq
    %v540 = vshrl.u32 %v539, 7
    %v541 = vsub.s32 0, %v540
    %v542 = vrot.slane %v538, %v541
    %v543 = vadd.f32 %v491, %v542
    %v544 = vxor.u32 %v543, 2147483648
    %v545 = vmul.f32 %v544, 1.442695
    %v546 = vpow.pop %v545
    %v547 = vadd.f32 %v546, 1.0
    %v548 = vrcp.pop %v547
    %v549 = vmul.f32 1.0, %v548
    %v550 = vld [vmem:[%s3 + $0x3] sm:$0x1]
    %v551 = vlaneseq
    %v552 = vshrl.u32 %v551, 7
    %v553 = vsub.s32 0, %v552
    %v554 = vrot.slane %v550, %v553
    %v555 = vadd.f32 %v493, %v554
    %v556 = vxor.u32 %v555, 2147483648
    %v557 = vmul.f32 %v556, 1.442695
    %v558 = vpow.pop %v557
    %v559 = vadd.f32 %v558, 1.0
    %v560 = vrcp.pop %v559
    %v561 = vmul.f32 1.0, %v560
    %v562 = vld [vmem:[%s3 + $0x4] sm:$0x1]
    %v563 = vlaneseq
    %v564 = vshrl.u32 %v563, 7
    %v565 = vsub.s32 0, %v564
    %v566 = vrot.slane %v562, %v565
    %v567 = vadd.f32 %v532, %v566
    %v568 = vld [vmem:[%s3 + $0x5] sm:$0x1]
    %v569 = vlaneseq
    %v570 = vshrl.u32 %v569, 7
    %v571 = vsub.s32 0, %v570
    %v572 = vrot.slane %v568, %v571
    %v573 = vadd.f32 %v534, %v572
    %v574 = vmul.f32 %v549, %v573
    %v575 = vadd.f32 %v567, %v574
    %v576 = vtanh.pop %v575
    %v577 = vsub.f32 1.0, %v561
    %v578 = vmul.f32 %v577, %v576
    %v579 = vmul.f32 %v561, %v38
    %v580 = vadd.f32 %v578, %v579
    %v581 = vpack.c.bf16 %v580, %v580
    %v582 = vld [vmem:[#allocation3 + $0x18] sm:$0xf]
    %v583 = vld [vmem:[#allocation3 + $0x34] sm:$0xf]
    %v584 = vld [vmem:[#allocation3 + $0x50] sm:$0xf]
    %v585 = vld [vmem:[#allocation3 + $0x6c] sm:$0xf]
    %v586 = vld [vmem:[#allocation3 + $0x88] sm:$0xf]
    %v587 = vld [vmem:[#allocation3 + $0xa4] sm:$0xf]
    %v588 = vld [vmem:[#allocation3 + $0xc0] sm:$0xf]
    %v589 = vld [vmem:[#allocation3 + $0xdc] sm:$0xf]
    %v590 = vld [vmem:[#allocation3 + $0xf8] sm:$0xf]
    %v591 = vld [vmem:[#allocation3 + $0x114] sm:$0xf]
    %v592 = vld [vmem:[#allocation3 + $0x130] sm:$0xf]
    %v593 = vld [vmem:[#allocation3 + $0x14c] sm:$0xf]
    %v594 = vld [vmem:[#allocation3 + $0x168] sm:$0xf]
    %v595 = vld [vmem:[#allocation3 + $0x184] sm:$0xf]
    %v596 = vld [vmem:[#allocation3 + $0x1a0] sm:$0xf]
    %v597 = vld [vmem:[#allocation3 + $0x1bc] sm:$0xf]
    %v598 = vld [vmem:[%s3 + $0x6] sm:$0x1]
    %v599 = vlaneseq
    %v600 = vshrl.u32 %v599, 7
    %v601 = vsub.s32 0, %v600
    %v602 = vrot.slane %v598, %v601
    %v619 = vunpack.c.l.b16 %v582
    %v620 = vunpack.c.l.b16 %v583
    %v621 = vunpack.c.l.b16 %v584
    %v622 = vunpack.c.l.b16 %v585
    %v623 = vunpack.c.l.b16 %v586
    %v624 = vunpack.c.l.b16 %v587
    %v625 = vunpack.c.l.b16 %v588
    %v626 = vunpack.c.l.b16 %v589
    %v627 = vunpack.c.l.b16 %v590
    %v628 = vunpack.c.l.b16 %v591
    %v629 = vunpack.c.l.b16 %v592
    %v630 = vunpack.c.l.b16 %v593
    %v631 = vunpack.c.l.b16 %v594
    %v632 = vunpack.c.l.b16 %v595
    %v633 = vunpack.c.l.b16 %v596
    %v634 = vunpack.c.l.b16 %v597
    %v635 = vpack.c.b16 %v620, %v619
    %v636 = vpack.c.b16 %v622, %v621
    %v637 = vpack.c.b16 %v624, %v623
    %v638 = vpack.c.b16 %v626, %v625
    %v639 = vpack.c.b16 %v628, %v627
    %v640 = vpack.c.b16 %v630, %v629
    %v641 = vpack.c.b16 %v632, %v631
    %v642 = vpack.c.b16 %v634, %v633
    %651 = vmatprep.subr.bf16.mxu0 0
    %652 = vmatpush1.bf16.msra.mxu0 %v642
    %653 = vmatprep.subr.bf16.mxu0 0
    %654 = vmatpush1.bf16.msra.mxu0 %v641
    %655 = vmatprep.subr.bf16.mxu0 0
    %656 = vmatpush1.bf16.msra.mxu0 %v640
    %657 = vmatprep.subr.bf16.mxu0 0
    %658 = vmatpush1.bf16.msra.mxu0 %v639
    %659 = vmatprep.subr.bf16.mxu0 0
    %660 = vmatpush1.bf16.msra.mxu0 %v638
    %661 = vmatprep.subr.bf16.mxu0 0
    %662 = vmatpush1.bf16.msra.mxu0 %v637
    %663 = vmatprep.subr.bf16.mxu0 0
    %664 = vmatpush1.bf16.msra.mxu0 %v636
    %665 = vmatprep.subr.bf16.mxu0 0
    %666 = vmatpush1.bf16.msra.mxu0 %v635
    %667 = vmatprep.subr.bf16.mxu0 0
    %668 = vmatpush2.bf16.msra.mxu0 0
    %669 = vmatprep.subr.bf16.mxu0 0
    %670 = vmatpush2.bf16.msra.mxu0 0
    %671 = vmatprep.subr.bf16.mxu0 0
    %672 = vmatpush2.bf16.msra.mxu0 0
    %673 = vmatprep.subr.bf16.mxu0 0
    %674 = vmatpush2.bf16.msra.mxu0 0
    %675 = vmatprep.subr.bf16.mxu0 0
    %676 = vmatpush2.bf16.msra.mxu0 0
    %677 = vmatprep.subr.bf16.mxu0 0
    %678 = vmatpush2.bf16.msra.mxu0 0
    %679 = vmatprep.subr.bf16.mxu0 0
    %680 = vmatpush2.bf16.msra.mxu0 0
    %681 = vmatprep.subr.bf16.mxu0 0
    %682 = vmatpush2.bf16.msra.mxu0 0
    %683 = vmatprep.mubr.bf16.mxu0 0
    %684 = vmatmul.mubr.bf16.gmra.mxu0 %v581
    %v685 = vpop.f32.mrf.mxu0
    %v686 = vadd.f32 %v602, %v685
    %v687 = vpop.f32.mrf.mxu0
    %v688 = vpop.f32.mrf.mxu0
    %v689 = vpop.f32.mrf.mxu0
    %690 = vdwg.mxu0
    %691 = vst [vmem:[#allocation2] sm:$0xff] %v580
    %692 = vst [vmem:[%s4] sm:$0xff] %v580
    %693 = vst [vmem:[%s4 + $0x8] sm:$0xff] %v686
    // Predicated region
    $region26: #{gru_policy_forward_seq.1} parent=1 // pred_check
      _
    $region27: #{gru_policy_forward_seq.1} parent=1 // pred_check_branch
      %695 = sbr.rel (0) target = $region29
    $region28: #{gru_policy_forward_seq.1} parent=1 // pred_region
      _
    $region29: #{gru_policy_forward_seq.1} parent=1 // pred_fallthru
      _
    // Predicated region
    $region30: #{gru_policy_forward_seq.1} parent=1 // pred_check
      _
    $region31: #{gru_policy_forward_seq.1} parent=1 // pred_check_branch
      %697 = sbr.rel (0) target = $region33
    $region32: #{gru_policy_forward_seq.1} parent=1 // pred_region
      _
    $region33: #{gru_policy_forward_seq.1} parent=1 // pred_fallthru
      _
    %698 = vsyncpa [#allocation4], 1

</llo_original>
